<compile_context>
chip_gen: v7x
topology: tpu7x:2x2x1
jax: 0.10.0
libtpu: 0.0.40
codegen_flags: <defaults>
</compile_context>

<pallas_src>
import functools

import jax
import jax.numpy as jnp
from jax import lax
from jax.experimental import pallas as pl
from jax.experimental.pallas import tpu as pltpu

LANE = 128
MAX_BLOCK_ROWS = 1024  # (1024,128) f32 = 512 KiB per stream per buffer


def _complex_act_kernel(re_ref, im_ref, ore_ref, oim_ref, *, alpha, beta):
    re = re_ref[...]
    im = im_ref[...]

    # |z|^2 and a single rsqrt instead of sqrt + divide (one fewer EUP op).
    sumsq = re * re + im * im
    # Guard sumsq == 0: rsqrt(0) = inf would give 0*inf = NaN for mag.
    inv = lax.rsqrt(jnp.where(sumsq > 0.0, sumsq, 1.0))
    mag = sumsq * inv      # == sqrt(sumsq); exactly 0 where z == 0
    sin_phase = im * inv   # == sin(angle(z)); exactly 0 where z == 0 (angle(0)=0)

    # softplus(mag), numerically stable for mag >= 0: mag + log1p(exp(-mag))
    sp = mag + jnp.log1p(jnp.exp(-mag))
    t_mag = alpha * sp
    t_phase = beta * sin_phase

    # output = t_mag * exp(i * t_phase)
    ore_ref[...] = t_mag * jnp.cos(t_phase)
    oim_ref[...] = t_mag * jnp.sin(t_phase)


def complex_activation(x, alpha=1.0, beta=1.0):
    """Pallas TPU implementation of ComplexActivation.forward for complex input x."""
    orig_shape = x.shape
    # complex64 real/imag are already f32; XLA fuses both extractions into one pass.
    # TODO(synk): jax.lax.bitcast_convert_type does not support complex dtypes, so a
    # zero-copy interleaved f32 view of the complex input is not expressible; the
    # split/recombine passes below are the remaining unavoidable wrapper traffic.
    re = jnp.real(x).astype(jnp.float32)
    im = jnp.imag(x).astype(jnp.float32)

    n = re.size
    pad = (-n) % LANE
    re_f = re.reshape(-1)
    im_f = im.reshape(-1)
    if pad:  # only pay a pad copy when needed (not for the common aligned case)
        re_f = jnp.pad(re_f, (0, pad))
        im_f = jnp.pad(im_f, (0, pad))
    rows = (n + pad) // LANE
    re_f = re_f.reshape(rows, LANE)
    im_f = im_f.reshape(rows, LANE)

    # Big blocks: full extent when small, else 1024 rows (divisible by 8); the
    # ragged last block (rows % block_rows != 0) is handled by Pallas masking.
    block_rows = rows if rows <= MAX_BLOCK_ROWS else MAX_BLOCK_ROWS
    grid = (pl.cdiv(rows, block_rows),)
    spec = pl.BlockSpec((block_rows, LANE), lambda i: (i, 0))

    kernel = functools.partial(_complex_act_kernel,
                               alpha=float(alpha), beta=float(beta))

    ore, oim = pl.pallas_call(
        kernel,
        out_shape=(
            jax.ShapeDtypeStruct((rows, LANE), jnp.float32),
            jax.ShapeDtypeStruct((rows, LANE), jnp.float32),
        ),
        grid_spec=pltpu.PrefetchScalarGridSpec(
            num_scalar_prefetch=0,
            grid=grid,
            in_specs=[spec, spec],
            out_specs=[spec, spec],
        ),
        compiler_params=pltpu.CompilerParams(
            dimension_semantics=("parallel",),
        ),
    )(re_f, im_f)

    ore = ore.reshape(-1)
    oim = oim.reshape(-1)
    if pad:
        ore = ore[:n]
        oim = oim[:n]
    ore = ore.reshape(orig_shape)
    oim = oim.reshape(orig_shape)
    return lax.complex(ore, oim)


def _reference(x, alpha, beta):
    mag = jnp.abs(x)
    phase = jnp.angle(x)
    t_mag = alpha * jax.nn.softplus(mag)
    t_phase = beta * jnp.sin(phase)
    return t_mag * jnp.exp(1j * t_phase)


if __name__ == "__main__":
    # Deterministic parameter init (matches alpha_init=1.0, beta_init=1.0)
    alpha_init = 1.0
    beta_init = 1.0

    key = jax.random.PRNGKey(0)
    k_re, k_im = jax.random.split(key)
    B, C, H, W = 2, 4, 16, 16
    re = jax.random.normal(k_re, (B, C, H, W), dtype=jnp.float32)
    im = jax.random.normal(k_im, (B, C, H, W), dtype=jnp.float32)
    x = re + 1j * im  # complex64

    out = complex_activation(x, alpha=alpha_init, beta=beta_init)
    out = jax.block_until_ready(out)

    ref = _reference(x, alpha_init, beta_init)
    assert out.shape == x.shape and out.dtype == jnp.complex64
    assert jnp.allclose(out, ref, atol=1e-5, rtol=1e-5)

    print("KERNEL_OK")
</pallas_src>

<mosaic_0001>
module attributes {stable_mosaic.version = 11 : i64} {
  func.func @_complex_act_kernel(%arg0: i32, %arg1: memref<16x128xf32, #tpu.memory_space<vmem>>, %arg2: memref<16x128xf32, #tpu.memory_space<vmem>>, %arg3: memref<16x128xf32, #tpu.memory_space<vmem>>, %arg4: memref<16x128xf32, #tpu.memory_space<vmem>>) attributes {dimension_semantics = [#tpu.dimension_semantics<parallel>], iteration_bounds = array<i64: 1>, scalar_prefetch = 0 : i64, scratch_operands = 0 : i64, tpu.core_type = #tpu.core_type<tc>, window_params = [{transform_indices = @transform_0, window_bounds = array<i64: 16, 128>}, {transform_indices = @transform_1, window_bounds = array<i64: 16, 128>}, {transform_indices = @transform_2, window_bounds = array<i64: 16, 128>}, {transform_indices = @transform_3, window_bounds = array<i64: 16, 128>}]} {
    %c0 = arith.constant 0 : index
    %c0_0 = arith.constant 0 : index
    %0 = vector.load %arg1[%c0, %c0_0] : memref<16x128xf32, #tpu.memory_space<vmem>>, vector<16x128xf32>
    %c0_1 = arith.constant 0 : index
    %c0_2 = arith.constant 0 : index
    %1 = vector.load %arg2[%c0_1, %c0_2] : memref<16x128xf32, #tpu.memory_space<vmem>>, vector<16x128xf32>
    %2 = arith.mulf %0, %0 : vector<16x128xf32>
    %3 = arith.mulf %1, %1 : vector<16x128xf32>
    %4 = arith.addf %2, %3 : vector<16x128xf32>
    %cst = arith.constant 0.000000e+00 : f32
    %5 = vector.broadcast %cst : f32 to vector<16x128xf32>
    %6 = arith.cmpf ogt, %4, %5 : vector<16x128xf32>
    %cst_3 = arith.constant 1.000000e+00 : f32
    %7 = vector.broadcast %cst_3 : f32 to vector<16x128xf32>
    %8 = arith.select %6, %4, %7 : vector<16x128xi1>, vector<16x128xf32>
    %9 = math.rsqrt %8 : vector<16x128xf32>
    %10 = arith.mulf %4, %9 : vector<16x128xf32>
    %11 = arith.mulf %1, %9 : vector<16x128xf32>
    %cst_4 = arith.constant 0.000000e+00 : f32
    %12 = vector.broadcast %cst_4 : f32 to vector<16x128xf32>
    %13 = arith.subf %12, %10 : vector<16x128xf32>
    %14 = math.exp %13 : vector<16x128xf32>
    %15 = math.log1p %14 : vector<16x128xf32>
    %16 = arith.addf %10, %15 : vector<16x128xf32>
    %cst_5 = arith.constant 1.000000e+00 : f32
    %17 = vector.broadcast %cst_5 : f32 to vector<16x128xf32>
    %18 = arith.mulf %17, %16 : vector<16x128xf32>
    %cst_6 = arith.constant 1.000000e+00 : f32
    %19 = vector.broadcast %cst_6 : f32 to vector<16x128xf32>
    %20 = arith.mulf %19, %11 : vector<16x128xf32>
    %21 = math.cos %20 : vector<16x128xf32>
    %22 = arith.mulf %18, %21 : vector<16x128xf32>
    %c0_7 = arith.constant 0 : index
    %c0_8 = arith.constant 0 : index
    %23 = vector.load %arg3[%c0_7, %c0_8] : memref<16x128xf32, #tpu.memory_space<vmem>>, vector<16x128xf32>
    tpu.vector_store %arg3[%c0_7, %c0_8], %22 {strides = array<i32>} : memref<16x128xf32, #tpu.memory_space<vmem>>, vector<16x128xf32>,
    %24 = math.sin %20 : vector<16x128xf32>
    %25 = arith.mulf %18, %24 : vector<16x128xf32>
    %c0_9 = arith.constant 0 : index
    %c0_10 = arith.constant 0 : index
    %26 = vector.load %arg4[%c0_9, %c0_10] : memref<16x128xf32, #tpu.memory_space<vmem>>, vector<16x128xf32>
    tpu.vector_store %arg4[%c0_9, %c0_10], %25 {strides = array<i32>} : memref<16x128xf32, #tpu.memory_space<vmem>>, vector<16x128xf32>,
    return
  }
  func.func @transform_0(%arg0: i32) -> (i32, i32) {
    %c0_i32 = arith.constant 0 : i32
    %c0_i32_0 = arith.constant 0 : i32
    return %arg0, %c0_i32 : i32, i32
  }
  func.func @transform_1(%arg0: i32) -> (i32, i32) {
    %c0_i32 = arith.constant 0 : i32
    %c0_i32_0 = arith.constant 0 : i32
    return %arg0, %c0_i32 : i32, i32
  }
  func.func @transform_2(%arg0: i32) -> (i32, i32) {
    %c0_i32 = arith.constant 0 : i32
    %c0_i32_0 = arith.constant 0 : i32
    return %arg0, %c0_i32 : i32, i32
  }
  func.func @transform_3(%arg0: i32) -> (i32, i32) {
    %c0_i32 = arith.constant 0 : i32
    %c0_i32_0 = arith.constant 0 : i32
    return %arg0, %c0_i32 : i32, i32
  }
}

</mosaic_0001>

<llo_original>
// kernel: tpu_custom_call.1
$region0: #{tpu_custom_call.1}
  #allocation0 [shape = 'u32[]', space=smem, size = 0x4, offset = 0x4, fixed_abs, tag = 'smem constant byte address 0x4 - core index']
  #allocation1 [shape = 'u32[144,128]{1,0:T(1,128)}', space=vmem, size = 0x12000, scoped, tag = 'internal scratch']
  %s0 = inlined_call_operand.hbm [shape: f32[16,128], index: 0, kind: input, shape index: {}]
  %s1 = inlined_call_operand.hbm [shape: f32[16,128], index: 1, kind: input, shape index: {}]
  %s2 = inlined_call_operand.hbm [shape: f32[16,128], index: 2, kind: output, shape index: {0}]
  %s3 = inlined_call_operand.hbm [shape: f32[16,128], index: 3, kind: output, shape index: {1}]
  %4 = xla_tuple %s2, %s3
  %s5 = sld [smem:[#allocation0]]
  $region34: #{tpu_custom_call.1} parent=0
    _
  %s7 = ssub.s32 1, %s5
  %s8 = scalar_select 0, %s7, %s5
  $region1: #{tpu_custom_call.1} parent=0
    #allocation2 [shape = 'u8[8192]{0}', space=vmem, size = 0x2000, scoped, tag = 'input window, operand 0, single buffered']
    #allocation3 [shape = 's32[1]{0}', space=sflag, size = 0x4, scoped, tag = 'scoped memory for tpu_custom_call.1']
    #allocation4 [shape = 's32[1]{0}', space=sflag, size = 0x4, scoped, tag = 'scoped memory for tpu_custom_call.1']
    #allocation5 [shape = 'u8[8192]{0}', space=vmem, size = 0x2000, scoped, tag = 'input window, operand 1, single buffered']
    #allocation6 [shape = 's32[1]{0}', space=sflag, size = 0x4, scoped, tag = 'scoped memory for tpu_custom_call.1']
    #allocation7 [shape = 'u8[8192]{0}', space=vmem, size = 0x2000, scoped, tag = 'output window, operand 0, single buffered']
    #allocation8 [shape = 'u8[8192]{0}', space=vmem, size = 0x2000, scoped, tag = 'output window, operand 1, single buffered']
    #allocation9 [shape = 's32[1]{0}', space=sflag, size = 0x4, scoped, tag = 'scoped memory for tpu_custom_call.1']
    %9 = vsyncpa [#allocation3], 0
    %10 = vsyncpa [#allocation6], 0
    %11 = vsyncpa [#allocation4], 0
    %12 = vsyncpa [#allocation9], 0
    // Predicated region
    $region2: #{tpu_custom_call.1} parent=1 // pred_check
      _
    $region3: #{tpu_custom_call.1} parent=1 // pred_check_branch
      %14 = sbr.rel (0) target = $region5
    $region4: #{tpu_custom_call.1} parent=1 // pred_region
      %s16 = ssub.s32 256, 256
      %17 = vsyncadd [#allocation3], %s16
      %s18 = sshll.u32 [#allocation2], 4
      %s19 = int_to_ptr.vmem [resolvable:$true] %s18
      %24 = dma.hbm_to_vmem [thread:$0]  %s0, 256, %s19, [#allocation3], 128, 128, 8
    $region5: #{tpu_custom_call.1} parent=1 // pred_fallthru
      _
    // Predicated region
    $region6: #{tpu_custom_call.1} parent=1 // pred_check
      _
    $region7: #{tpu_custom_call.1} parent=1 // pred_check_branch
      %26 = sbr.rel (0) target = $region9
    $region8: #{tpu_custom_call.1} parent=1 // pred_region
      %s28 = ssub.s32 256, 256
      %29 = vsyncadd [#allocation6], %s28
      %s30 = sshll.u32 [#allocation5], 4
      %s31 = int_to_ptr.vmem [resolvable:$true] %s30
      %36 = dma.hbm_to_vmem [thread:$0]  %s1, 256, %s31, [#allocation6], 128, 128, 8
    $region9: #{tpu_custom_call.1} parent=1 // pred_fallthru
      _
    // Predicated region
    $region10: #{tpu_custom_call.1} parent=1 // pred_check
      _
    $region11: #{tpu_custom_call.1} parent=1 // pred_check_branch
      %38 = sbr.rel (0) target = $region13
    $region12: #{tpu_custom_call.1} parent=1 // pred_region
      %39 = dma.done [#allocation3], 256
    $region13: #{tpu_custom_call.1} parent=1 // pred_fallthru
      _
    // Predicated region
    $region14: #{tpu_custom_call.1} parent=1 // pred_check
      _
    $region15: #{tpu_custom_call.1} parent=1 // pred_check_branch
      %41 = sbr.rel (0) target = $region17
    $region16: #{tpu_custom_call.1} parent=1 // pred_region
      %42 = dma.done [#allocation6], 256
    $region17: #{tpu_custom_call.1} parent=1 // pred_fallthru
      _
    %v43 = vld [vmem:[#allocation2] sm:$0xff]
    %v44 = vld [vmem:[#allocation2 + $0x8] sm:$0xff]
    %v45 = vld [vmem:[#allocation5] sm:$0xff]
    %v46 = vld [vmem:[#allocation5 + $0x8] sm:$0xff]
    %v47 = vmul.f32 %v43, %v43
    %v48 = vmul.f32 %v44, %v44
    %v49 = vmul.f32 %v45, %v45
    %v50 = vmul.f32 %v46, %v46
    %v51 = vadd.f32 %v47, %v49
    %v52 = vadd.f32 %v48, %v50
    %vm53 = vcmp.gt.f32.partialorder %v51, 0.0
    %vm54 = vcmp.gt.f32.partialorder %v52, 0.0
    %v55 = vsel %vm53, %v51, 1.0
    %v56 = vsel %vm54, %v52, 1.0
    %v57 = vrsqrt.pop %v55
    %v58 = vrsqrt.pop %v56
    %v59 = vmul.f32 %v51, %v57
    %v60 = vmul.f32 %v52, %v58
    %v61 = vmul.f32 %v45, %v57
    %v62 = vmul.f32 %v46, %v58
    %v63 = vsub.f32 0.0, %v59
    %v64 = vsub.f32 0.0, %v60
    %v65 = vmul.f32 %v63, 1.442695
    %v66 = vpow.pop %v65
    %v67 = vmul.f32 %v64, 1.442695
    %v68 = vpow.pop %v67
    %v69 = vadd.f32 %v66, 1.0
    %v70 = vlog2.pop %v69
    %v71 = vmul.f32 %v70, 0.6931472
    %v72 = vmul.f32 -0.5, %v66
    %v73 = vadd.f32 %v72, 1.0
    %v74 = vmul.f32 %v73, %v66
    %v75 = vand.u32 2147483647, %v66
    %vm76 = vcmp.lt.f32.partialorder %v75, 0.0004427343
    %v77 = vsel %vm76, %v74, %v71
    %v78 = vadd.f32 %v68, 1.0
    %v79 = vlog2.pop %v78
    %v80 = vmul.f32 %v79, 0.6931472
    %v81 = vmul.f32 -0.5, %v68
    %v82 = vadd.f32 %v81, 1.0
    %v83 = vmul.f32 %v82, %v68
    %v84 = vand.u32 2147483647, %v68
    %vm85 = vcmp.lt.f32.partialorder %v84, 0.0004427343
    %v86 = vsel %vm85, %v83, %v80
    %v87 = vadd.f32 %v59, %v77
    %v88 = vadd.f32 %v60, %v86
    %v89 = vand.u32 2147483647, %v61
    %vm90 = vcmp.le.f32.partialorder %v89, 0.7853982
    %vm91 = vcmp.lt.s32.totalorder %v61, 0
    %v92 = vand.u32 %v61, 2139095040
    %v93 = vshrl.u32 %v92, 23
    %v94 = vsub.s32 %v93, 127
    %v95 = vand.u32 2147483647, %v61
    %v96 = vand.u32 %v95, 8388607
    %v97 = vor.u32 %v96, 8388608
    %v98 = vsub.s32 0, %v97
    %v99 = vadd.s32 %v94, 1
    %vm100 = vcmp.gt.s32.totalorder %v99, 0
    %v101 = vsel %vm100, %v99, 0
    %v102 = vshrl.u32 %v101, 5
    %v103 = vand.u32 %v101, 31
    %v104 = vsub.s32 32, %v103
    %v105 = vshrl.u32 683565275, %v104
    %v106 = vshll.u32 683565275, %v103
    %v107 = vshrl.u32 2475754826, %v104
    %v108 = vor.u32 %v106, %v107
    %v109 = vshll.u32 2475754826, %v103
    %v110 = vshrl.u32 2131351028, %v104
    %v111 = vor.u32 %v109, %v110
    %v112 = vshll.u32 2131351028, %v103
    %v113 = vshrl.u32 2102212464, %v104
    %v114 = vor.u32 %v112, %v113
    %v115 = vshll.u32 2102212464, %v103
    %v116 = vshrl.u32 920167782, %v104
    %v117 = vor.u32 %v115, %v116
    %v118 = vshll.u32 920167782, %v103
    %v119 = vshrl.u32 1326507024, %v104
    %v120 = vor.u32 %v118, %v119
    %vm121 = vcmp.lt.s32.totalorder %v102, 1
    %vm122 = vcmp.lt.s32.totalorder %v102, 2
    %vm123 = vcmp.lt.s32.totalorder %v102, 3
    %vm124 = vcmp.lt.s32.totalorder %v102, 4
    %v125 = vsel %vm121, %v105, %v108
    %v126 = vsel %vm124, %v114, 2102212464
    %v127 = vsel %vm123, %v111, %v126
    %v128 = vsel %vm122, %v125, %v127
    %v129 = vsel %vm121, %v108, %v111
    %v130 = vsel %vm124, %v117, 920167782
    %v131 = vsel %vm123, %v114, %v130
    %v132 = vsel %vm122, %v129, %v131
    %v133 = vsel %vm121, %v111, %v114
    %v134 = vsel %vm124, %v120, 1326507024
    %v135 = vsel %vm123, %v117, %v134
    %v136 = vsel %vm122, %v133, %v135
    %v137 = vshll.u32 %v97, 8
    %v138 = vmul.u32.u64.compose %v137, %v136
    %v139 = vextract.low.u32 %v138
    %v140 = vextract.high.u32 %v138
    %v141 = vmul.u32.u64.compose %v137, %v132
    %v142 = vextract.low.u32 %v141
    %v143 = vextract.high.u32 %v141
    %v144 = vmul.u32 %v137, %v128
    %v145 = vadd.s32 %v140, %v142
    %vm146 = vc.u32 %v140, %v142
    %v147 = vadd.s32 %v143, 1
    %v148 = vsel %vm146, %v147, %v143
    %v149 = vadd.s32 %v144, %v148
    %v150 = vadd.s32 %v149, 536870912
    %v151 = vshrl.u32 %v150, 30
    %v152 = vshll.u32 %v151, 30
    %v153 = vsub.s32 %v149, %v152
    %vm154 = vcmp.lt.s32.totalorder %v153, 0
    %v155 = vsub.s32 0, %v153
    %v156 = vsel %vm154, %v155, %v153
    %v157 = vclz %v156
    %v158 = vsub.s32 %v157, 2
    %vm159 = vcmp.gt.s32.totalorder 0, %v158
    %v160 = vsel %vm159, 0, %v158
    %v161 = vsub.s32 32, %v160
    %v162 = vshll.u32 %v153, %v160
    %v163 = vshrl.u32 %v145, %v161
    %v164 = vor.u32 %v162, %v163
    %v165 = vsub.s32 4294967266, %v160
    %v166 = vadd.s32 %v165, 127
    %v167 = vshll.u32 %v166, 23
    %v168 = vor.u32 4788187, %v167
    %v169 = vand.u32 2147483647, %v168
    %v171 = vcvt.s32.f32 %v164
    %v172 = vmul.f32 %v171, %v169
    %v173 = vxor.u32 %v172, 2147483648
    %v174 = vsel %vm91, %v173, %v172
    %v175 = vsub.s32 4, %v151
    %v176 = vsel %vm91, %v175, %v151
    %v177 = vsel %vm90, %v61, %v174
    %v178 = vsel %vm90, 0, %v176
    %v179 = vcosq.f32.pop %v177
    %v180 = vsinq.f32.pop %v177
    %vm181 = vweird.f32 %v61
    %v182 = vand.u32 %v178, 3
    %vm183 = vcmp.lt.s32.totalorder %v182, 2
    %vm184 = vcmp.eq.s32.totalorder %v182, 0
    %v185 = vxor.u32 %v180, 2147483648
    %v186 = vsel %vm184, %v179, %v185
    %vm187 = vcmp.eq.s32.totalorder %v182, 2
    %v188 = vxor.u32 %v179, 2147483648
    %v189 = vsel %vm187, %v188, %v180
    %v190 = vsel %vm183, %v186, %v189
    %v191 = vsel %vm181, nan, %v190
    %v192 = vand.u32 2147483647, %v62
    %vm193 = vcmp.le.f32.partialorder %v192, 0.7853982
    %vm194 = vcmp.lt.s32.totalorder %v62, 0
    %v195 = vand.u32 %v62, 2139095040
    %v196 = vshrl.u32 %v195, 23
    %v197 = vsub.s32 %v196, 127
    %v198 = vand.u32 2147483647, %v62
    %v199 = vand.u32 %v198, 8388607
    %v200 = vor.u32 %v199, 8388608
    %v201 = vsub.s32 0, %v200
    %v202 = vadd.s32 %v197, 1
    %vm203 = vcmp.gt.s32.totalorder %v202, 0
    %v204 = vsel %vm203, %v202, 0
    %v205 = vshrl.u32 %v204, 5
    %v206 = vand.u32 %v204, 31
    %v207 = vsub.s32 32, %v206
    %v208 = vshrl.u32 683565275, %v207
    %v209 = vshll.u32 683565275, %v206
    %v210 = vshrl.u32 2475754826, %v207
    %v211 = vor.u32 %v209, %v210
    %v212 = vshll.u32 2475754826, %v206
    %v213 = vshrl.u32 2131351028, %v207
    %v214 = vor.u32 %v212, %v213
    %v215 = vshll.u32 2131351028, %v206
    %v216 = vshrl.u32 2102212464, %v207
    %v217 = vor.u32 %v215, %v216
    %v218 = vshll.u32 2102212464, %v206
    %v219 = vshrl.u32 920167782, %v207
    %v220 = vor.u32 %v218, %v219
    %v221 = vshll.u32 920167782, %v206
    %v222 = vshrl.u32 1326507024, %v207
    %v223 = vor.u32 %v221, %v222
    %vm224 = vcmp.lt.s32.totalorder %v205, 1
    %vm225 = vcmp.lt.s32.totalorder %v205, 2
    %vm226 = vcmp.lt.s32.totalorder %v205, 3
    %vm227 = vcmp.lt.s32.totalorder %v205, 4
    %v228 = vsel %vm224, %v208, %v211
    %v229 = vsel %vm227, %v217, 2102212464
    %v230 = vsel %vm226, %v214, %v229
    %v231 = vsel %vm225, %v228, %v230
    %v232 = vsel %vm224, %v211, %v214
    %v233 = vsel %vm227, %v220, 920167782
    %v234 = vsel %vm226, %v217, %v233
    %v235 = vsel %vm225, %v232, %v234
    %v236 = vsel %vm224, %v214, %v217
    %v237 = vsel %vm227, %v223, 1326507024
    %v238 = vsel %vm226, %v220, %v237
    %v239 = vsel %vm225, %v236, %v238
    %v240 = vshll.u32 %v200, 8
    %v241 = vmul.u32.u64.compose %v240, %v239
    %v242 = vextract.low.u32 %v241
    %v243 = vextract.high.u32 %v241
    %v244 = vmul.u32.u64.compose %v240, %v235
    %v245 = vextract.low.u32 %v244
    %v246 = vextract.high.u32 %v244
    %v247 = vmul.u32 %v240, %v231
    %v248 = vadd.s32 %v243, %v245
    %vm249 = vc.u32 %v243, %v245
    %v250 = vadd.s32 %v246, 1
    %v251 = vsel %vm249, %v250, %v246
    %v252 = vadd.s32 %v247, %v251
    %v253 = vadd.s32 %v252, 536870912
    %v254 = vshrl.u32 %v253, 30
    %v255 = vshll.u32 %v254, 30
    %v256 = vsub.s32 %v252, %v255
    %vm257 = vcmp.lt.s32.totalorder %v256, 0
    %v258 = vsub.s32 0, %v256
    %v259 = vsel %vm257, %v258, %v256
    %v260 = vclz %v259
    %v261 = vsub.s32 %v260, 2
    %vm262 = vcmp.gt.s32.totalorder 0, %v261
    %v263 = vsel %vm262, 0, %v261
    %v264 = vsub.s32 32, %v263
    %v265 = vshll.u32 %v256, %v263
    %v266 = vshrl.u32 %v248, %v264
    %v267 = vor.u32 %v265, %v266
    %v268 = vsub.s32 4294967266, %v263
    %v269 = vadd.s32 %v268, 127
    %v270 = vshll.u32 %v269, 23
    %v271 = vor.u32 4788187, %v270
    %v272 = vand.u32 2147483647, %v271
    %v274 = vcvt.s32.f32 %v267
    %v275 = vmul.f32 %v274, %v272
    %v276 = vxor.u32 %v275, 2147483648
    %v277 = vsel %vm194, %v276, %v275
    %v278 = vsub.s32 4, %v254
    %v279 = vsel %vm194, %v278, %v254
    %v280 = vsel %vm193, %v62, %v277
    %v281 = vsel %vm193, 0, %v279
    %v282 = vcosq.f32.pop %v280
    %v283 = vsinq.f32.pop %v280
    %vm284 = vweird.f32 %v62
    %v285 = vand.u32 %v281, 3
    %vm286 = vcmp.lt.s32.totalorder %v285, 2
    %vm287 = vcmp.eq.s32.totalorder %v285, 0
    %v288 = vxor.u32 %v283, 2147483648
    %v289 = vsel %vm287, %v282, %v288
    %vm290 = vcmp.eq.s32.totalorder %v285, 2
    %v291 = vxor.u32 %v282, 2147483648
    %v292 = vsel %vm290, %v291, %v283
    %v293 = vsel %vm286, %v289, %v292
    %v294 = vsel %vm284, nan, %v293
    %v295 = vmul.f32 %v87, %v191
    %v296 = vmul.f32 %v88, %v294
    %297 = vst [vmem:[#allocation7] sm:$0xff] %v295
    %298 = vst [vmem:[#allocation7 + $0x8] sm:$0xff] %v296
    %v299 = vand.u32 2147483647, %v61
    %vm300 = vcmp.le.f32.partialorder %v299, 0.7853982
    %vm301 = vcmp.lt.s32.totalorder %v61, 0
    %v302 = vand.u32 %v61, 2139095040
    %v303 = vshrl.u32 %v302, 23
    %v304 = vsub.s32 %v303, 127
    %v305 = vand.u32 2147483647, %v61
    %v306 = vand.u32 %v305, 8388607
    %v307 = vor.u32 %v306, 8388608
    %v308 = vsub.s32 0, %v307
    %v309 = vadd.s32 %v304, 1
    %vm310 = vcmp.gt.s32.totalorder %v309, 0
    %v311 = vsel %vm310, %v309, 0
    %v312 = vshrl.u32 %v311, 5
    %v313 = vand.u32 %v311, 31
    %v314 = vsub.s32 32, %v313
    %v315 = vshrl.u32 683565275, %v314
    %v316 = vshll.u32 683565275, %v313
    %v317 = vshrl.u32 2475754826, %v314
    %v318 = vor.u32 %v316, %v317
    %v319 = vshll.u32 2475754826, %v313
    %v320 = vshrl.u32 2131351028, %v314
    %v321 = vor.u32 %v319, %v320
    %v322 = vshll.u32 2131351028, %v313
    %v323 = vshrl.u32 2102212464, %v314
    %v324 = vor.u32 %v322, %v323
    %v325 = vshll.u32 2102212464, %v313
    %v326 = vshrl.u32 920167782, %v314
    %v327 = vor.u32 %v325, %v326
    %v328 = vshll.u32 920167782, %v313
    %v329 = vshrl.u32 1326507024, %v314
    %v330 = vor.u32 %v328, %v329
    %vm331 = vcmp.lt.s32.totalorder %v312, 1
    %vm332 = vcmp.lt.s32.totalorder %v312, 2
    %vm333 = vcmp.lt.s32.totalorder %v312, 3
    %vm334 = vcmp.lt.s32.totalorder %v312, 4
    %v335 = vsel %vm331, %v315, %v318
    %v336 = vsel %vm334, %v324, 2102212464
    %v337 = vsel %vm333, %v321, %v336
    %v338 = vsel %vm332, %v335, %v337
    %v339 = vsel %vm331, %v318, %v321
    %v340 = vsel %vm334, %v327, 920167782
    %v341 = vsel %vm333, %v324, %v340
    %v342 = vsel %vm332, %v339, %v341
    %v343 = vsel %vm331, %v321, %v324
    %v344 = vsel %vm334, %v330, 1326507024
    %v345 = vsel %vm333, %v327, %v344
    %v346 = vsel %vm332, %v343, %v345
    %v347 = vshll.u32 %v307, 8
    %v348 = vmul.u32.u64.compose %v347, %v346
    %v349 = vextract.low.u32 %v348
    %v350 = vextract.high.u32 %v348
    %v351 = vmul.u32.u64.compose %v347, %v342
    %v352 = vextract.low.u32 %v351
    %v353 = vextract.high.u32 %v351
    %v354 = vmul.u32 %v347, %v338
    %v355 = vadd.s32 %v350, %v352
    %vm356 = vc.u32 %v350, %v352
    %v357 = vadd.s32 %v353, 1
    %v358 = vsel %vm356, %v357, %v353
    %v359 = vadd.s32 %v354, %v358
    %v360 = vadd.s32 %v359, 536870912
    %v361 = vshrl.u32 %v360, 30
    %v362 = vshll.u32 %v361, 30
    %v363 = vsub.s32 %v359, %v362
    %vm364 = vcmp.lt.s32.totalorder %v363, 0
    %v365 = vsub.s32 0, %v363
    %v366 = vsel %vm364, %v365, %v363
    %v367 = vclz %v366
    %v368 = vsub.s32 %v367, 2
    %vm369 = vcmp.gt.s32.totalorder 0, %v368
    %v370 = vsel %vm369, 0, %v368
    %v371 = vsub.s32 32, %v370
    %v372 = vshll.u32 %v363, %v370
    %v373 = vshrl.u32 %v355, %v371
    %v374 = vor.u32 %v372, %v373
    %v375 = vsub.s32 4294967266, %v370
    %v376 = vadd.s32 %v375, 127
    %v377 = vshll.u32 %v376, 23
    %v378 = vor.u32 4788187, %v377
    %v379 = vand.u32 2147483647, %v378
    %v381 = vcvt.s32.f32 %v374
    %v382 = vmul.f32 %v381, %v379
    %v383 = vxor.u32 %v382, 2147483648
    %v384 = vsel %vm301, %v383, %v382
    %v385 = vsub.s32 4, %v361
    %v386 = vsel %vm301, %v385, %v361
    %v387 = vsel %vm300, %v61, %v384
    %v388 = vsel %vm300, 0, %v386
    %v389 = vcosq.f32.pop %v387
    %v390 = vsinq.f32.pop %v387
    %vm391 = vweird.f32 %v61
    %v392 = vadd.s32 %v388, 3
    %v393 = vand.u32 %v392, 3
    %vm394 = vcmp.lt.s32.totalorder %v393, 2
    %vm395 = vcmp.eq.s32.totalorder %v393, 0
    %v396 = vxor.u32 %v390, 2147483648
    %v397 = vsel %vm395, %v389, %v396
    %vm398 = vcmp.eq.s32.totalorder %v393, 2
    %v399 = vxor.u32 %v389, 2147483648
    %v400 = vsel %vm398, %v399, %v390
    %v401 = vsel %vm394, %v397, %v400
    %v402 = vsel %vm391, nan, %v401
    %v403 = vand.u32 2147483647, %v62
    %vm404 = vcmp.le.f32.partialorder %v403, 0.7853982
    %vm405 = vcmp.lt.s32.totalorder %v62, 0
    %v406 = vand.u32 %v62, 2139095040
    %v407 = vshrl.u32 %v406, 23
    %v408 = vsub.s32 %v407, 127
    %v409 = vand.u32 2147483647, %v62
    %v410 = vand.u32 %v409, 8388607
    %v411 = vor.u32 %v410, 8388608
    %v412 = vsub.s32 0, %v411
    %v413 = vadd.s32 %v408, 1
    %vm414 = vcmp.gt.s32.totalorder %v413, 0
    %v415 = vsel %vm414, %v413, 0
    %v416 = vshrl.u32 %v415, 5
    %v417 = vand.u32 %v415, 31
    %v418 = vsub.s32 32, %v417
    %v419 = vshrl.u32 683565275, %v418
    %v420 = vshll.u32 683565275, %v417
    %v421 = vshrl.u32 2475754826, %v418
    %v422 = vor.u32 %v420, %v421
    %v423 = vshll.u32 2475754826, %v417
    %v424 = vshrl.u32 2131351028, %v418
    %v425 = vor.u32 %v423, %v424
    %v426 = vshll.u32 2131351028, %v417
    %v427 = vshrl.u32 2102212464, %v418
    %v428 = vor.u32 %v426, %v427
    %v429 = vshll.u32 2102212464, %v417
    %v430 = vshrl.u32 920167782, %v418
    %v431 = vor.u32 %v429, %v430
    %v432 = vshll.u32 920167782, %v417
    %v433 = vshrl.u32 1326507024, %v418
    %v434 = vor.u32 %v432, %v433
    %vm435 = vcmp.lt.s32.totalorder %v416, 1
    %vm436 = vcmp.lt.s32.totalorder %v416, 2
    %vm437 = vcmp.lt.s32.totalorder %v416, 3
    %vm438 = vcmp.lt.s32.totalorder %v416, 4
    %v439 = vsel %vm435, %v419, %v422
    %v440 = vsel %vm438, %v428, 2102212464
    %v441 = vsel %vm437, %v425, %v440
    %v442 = vsel %vm436, %v439, %v441
    %v443 = vsel %vm435, %v422, %v425
    %v444 = vsel %vm438, %v431, 920167782
    %v445 = vsel %vm437, %v428, %v444
    %v446 = vsel %vm436, %v443, %v445
    %v447 = vsel %vm435, %v425, %v428
    %v448 = vsel %vm438, %v434, 1326507024
    %v449 = vsel %vm437, %v431, %v448
    %v450 = vsel %vm436, %v447, %v449
    %v451 = vshll.u32 %v411, 8
    %v452 = vmul.u32.u64.compose %v451, %v450
    %v453 = vextract.low.u32 %v452
    %v454 = vextract.high.u32 %v452
    %v455 = vmul.u32.u64.compose %v451, %v446
    %v456 = vextract.low.u32 %v455
    %v457 = vextract.high.u32 %v455
    %v458 = vmul.u32 %v451, %v442
    %v459 = vadd.s32 %v454, %v456
    %vm460 = vc.u32 %v454, %v456
    %v461 = vadd.s32 %v457, 1
    %v462 = vsel %vm460, %v461, %v457
    %v463 = vadd.s32 %v458, %v462
    %v464 = vadd.s32 %v463, 536870912
    %v465 = vshrl.u32 %v464, 30
    %v466 = vshll.u32 %v465, 30
    %v467 = vsub.s32 %v463, %v466
    %vm468 = vcmp.lt.s32.totalorder %v467, 0
    %v469 = vsub.s32 0, %v467
    %v470 = vsel %vm468, %v469, %v467
    %v471 = vclz %v470
    %v472 = vsub.s32 %v471, 2
    %vm473 = vcmp.gt.s32.totalorder 0, %v472
    %v474 = vsel %vm473, 0, %v472
    %v475 = vsub.s32 32, %v474
    %v476 = vshll.u32 %v467, %v474
    %v477 = vshrl.u32 %v459, %v475
    %v478 = vor.u32 %v476, %v477
    %v479 = vsub.s32 4294967266, %v474
    %v480 = vadd.s32 %v479, 127
    %v481 = vshll.u32 %v480, 23
    %v482 = vor.u32 4788187, %v481
    %v483 = vand.u32 2147483647, %v482
    %v485 = vcvt.s32.f32 %v478
    %v486 = vmul.f32 %v485, %v483
    %v487 = vxor.u32 %v486, 2147483648
    %v488 = vsel %vm405, %v487, %v486
    %v489 = vsub.s32 4, %v465
    %v490 = vsel %vm405, %v489, %v465
    %v491 = vsel %vm404, %v62, %v488
    %v492 = vsel %vm404, 0, %v490
    %v493 = vcosq.f32.pop %v491
    %v494 = vsinq.f32.pop %v491
    %vm495 = vweird.f32 %v62
    %v496 = vadd.s32 %v492, 3
    %v497 = vand.u32 %v496, 3
    %vm498 = vcmp.lt.s32.totalorder %v497, 2
    %vm499 = vcmp.eq.s32.totalorder %v497, 0
    %v500 = vxor.u32 %v494, 2147483648
    %v501 = vsel %vm499, %v493, %v500
    %vm502 = vcmp.eq.s32.totalorder %v497, 2
    %v503 = vxor.u32 %v493, 2147483648
    %v504 = vsel %vm502, %v503, %v494
    %v505 = vsel %vm498, %v501, %v504
    %v506 = vsel %vm495, nan, %v505
    %v507 = vmul.f32 %v87, %v402
    %v508 = vmul.f32 %v88, %v506
    %509 = vst [vmem:[#allocation8] sm:$0xff] %v507
    %510 = vst [vmem:[#allocation8 + $0x8] sm:$0xff] %v508
    // Predicated region
    $region18: #{tpu_custom_call.1} parent=1 // pred_check
      _
    $region19: #{tpu_custom_call.1} parent=1 // pred_check_branch
      %512 = sbr.rel (0) target = $region21
    $region20: #{tpu_custom_call.1} parent=1 // pred_region
      %s514 = ssub.s32 256, 256
      %515 = vsyncadd [#allocation4], %s514
      %s516 = sshll.u32 [#allocation7], 4
      %s517 = int_to_ptr.vmem [resolvable:$true] %s516
      %522 = dma.vmem_to_hbm [thread:$0]  %s517, 256, %s2, [#allocation4], 128, 128, 8
    $region21: #{tpu_custom_call.1} parent=1 // pred_fallthru
      _
    // Predicated region
    $region22: #{tpu_custom_call.1} parent=1 // pred_check
      _
    $region23: #{tpu_custom_call.1} parent=1 // pred_check_branch
      %524 = sbr.rel (0) target = $region25
    $region24: #{tpu_custom_call.1} parent=1 // pred_region
      %s526 = ssub.s32 256, 256
      %527 = vsyncadd [#allocation9], %s526
      %s528 = sshll.u32 [#allocation8], 4
      %s529 = int_to_ptr.vmem [resolvable:$true] %s528
      %534 = dma.vmem_to_hbm [thread:$0]  %s529, 256, %s3, [#allocation9], 128, 128, 8
    $region25: #{tpu_custom_call.1} parent=1 // pred_fallthru
      _
    // Predicated region
    $region26: #{tpu_custom_call.1} parent=1 // pred_check
      _
    $region27: #{tpu_custom_call.1} parent=1 // pred_check_branch
      %536 = sbr.rel (0) target = $region29
    $region28: #{tpu_custom_call.1} parent=1 // pred_region
      %537 = dma.done [#allocation4], 256
    $region29: #{tpu_custom_call.1} parent=1 // pred_fallthru
      _
    // Predicated region
    $region30: #{tpu_custom_call.1} parent=1 // pred_check
      _
    $region31: #{tpu_custom_call.1} parent=1 // pred_check_branch
      %539 = sbr.rel (0) target = $region33
    $region32: #{tpu_custom_call.1} parent=1 // pred_region
      %540 = dma.done [#allocation9], 256
    $region33: #{tpu_custom_call.1} parent=1 // pred_fallthru
      _
    %541 = vsyncpa [#allocation3], 1
    %542 = vsyncpa [#allocation6], 1
    %543 = vsyncpa [#allocation4], 1
    %544 = vsyncpa [#allocation9], 1

</llo_original>
